<compile_context>
chip_gen: v7x
topology: tpu7x:2x2x1
jax: 0.10.0
libtpu: 0.0.40
codegen_flags: <defaults>
</compile_context>

<pallas_src>
import jax
import jax.numpy as jnp
from jax.experimental import pallas as pl
from jax.experimental.pallas import tpu as pltpu


def _round_up(x, m):
    return (x + m - 1) // m * m


def _cdiv(a, b):
    return (a + b - 1) // b


def _make_mlp_kernel(layer_out_dims):
    """Kernel: (x_ref, bias_ref, w0, w1, ..., o_ref). Whole MLP on one batch tile."""
    n_layers = len(layer_out_dims)

    def kernel(x_ref, b_ref, *refs):
        o_ref = refs[-1]
        h = x_ref[...]                                       # (TB, K0p) bf16
        for l in range(n_layers):
            w = refs[l][...]                                 # (Kp, Np) bf16, VMEM-resident
            b = b_ref[l:l + 1, :layer_out_dims[l]]           # (1, Np)  f32, VMEM-resident
            acc = jnp.dot(h, w, preferred_element_type=jnp.float32) + b
            if l < n_layers - 1:
                h = jnp.maximum(acc, 0.0).astype(jnp.bfloat16)   # ReLU in f32, bf16 for next MXU pass
            else:
                o_ref[...] = acc.astype(o_ref.dtype)             # last layer: no activation

    return kernel


def init_mlp_params(key, input_dim, output_dim, dim, n_blk, dtype=jnp.float32):
    """nn.Linear-style init (uniform +-1/sqrt(fan_in)); f32 master weights."""
    dims = [input_dim] + [dim] * (n_blk - 1) + [output_dim]
    params = []
    for i in range(n_blk):
        key, kw, kb = jax.random.split(key, 3)
        fan_in = dims[i]
        bound = 1.0 / jnp.sqrt(fan_in)
        w = jax.random.uniform(kw, (dims[i], dims[i + 1]), dtype,
                               minval=-bound, maxval=bound)
        b = jax.random.uniform(kb, (dims[i + 1],), dtype,
                               minval=-bound, maxval=bound)
        params.append((w, b))
    return params


def prepare_mlp_params(params):
    """Pad layers to (128-mult, 128-mult), cast W to bf16, pack biases into one array."""
    w_list, np_list, b_rows = [], [], []
    for w, b in params:
        K, N = w.shape
        Kp, Np = _round_up(K, 128), _round_up(N, 128)
        wp = jnp.zeros((Kp, Np), jnp.bfloat16).at[:K, :N].set(w.astype(jnp.bfloat16))
        w_list.append(wp)
        np_list.append(Np)
        b_rows.append((b.astype(jnp.float32), N))
    max_np = max(np_list)
    b_all = jnp.zeros((len(params), max_np), jnp.float32)
    for l, (b, N) in enumerate(b_rows):
        b_all = b_all.at[l, :N].set(b)
    return w_list, b_all, tuple(np_list)


def mlp_forward(x, prepared_params, output_dim, out_dtype=jnp.float32):
    """Fused Pallas MLP forward. x: any shape (B, ...) flattened to (B, -1)."""
    w_list, b_all, np_list = prepared_params
    B = x.shape[0]
    h = x.reshape(B, -1)                                     # x.view(x.size(0), -1) (glue)
    K0 = h.shape[1]
    K0p = w_list[0].shape[0]
    Np_last = np_list[-1]
    kp_list = [w.shape[0] for w in w_list]

    # Batch tile: sublane-full (>=8), <=512 (~85% of HBM roofline already on v6e),
    # >=2 grid steps when B allows (both v7x TCs get work), minimal tail padding.
    TB_MAX = 512
    n_tiles = 1 if B <= 8 else max(_cdiv(B, TB_MAX), 2)
    TB = min(TB_MAX, _round_up(_cdiv(B, n_tiles), 8))
    Bp = _round_up(B, TB)

    if Bp == B and K0p == K0:
        xp = h.astype(jnp.bfloat16)                          # aligned: no padded HBM round trip
    else:
        xp = jnp.zeros((Bp, K0p), jnp.bfloat16).at[:B, :K0].set(h.astype(jnp.bfloat16))

    # Explicit VMEM budget from the real footprint (review item).
    out_bytes = jnp.dtype(out_dtype).itemsize
    weight_bytes = sum(int(w.size) * 2 for w in w_list)      # bf16, single-buffered
    bias_bytes = int(b_all.size) * 4                         # f32,  single-buffered
    max_np = max(np_list)
    max_kp = max(kp_list + [K0p])
    footprint = (2 * TB * K0p * 2                            # input double buffer (bf16)
                 + 2 * TB * Np_last * out_bytes              # output double buffer
                 + weight_bytes + bias_bytes                 # resident params
                 + 2 * TB * max_np * 4                       # f32 accumulators
                 + 2 * TB * max_kp * 2)                      # bf16 activations
    vmem_limit = int(min(max(2 * footprint + (4 << 20), 32 << 20), 64 << 20))

    flops = sum(2 * Bp * w.shape[0] * w.shape[1] for w in w_list)
    bytes_accessed = int(xp.size) * 2 + weight_bytes + bias_bytes + Bp * Np_last * out_bytes

    kernel = _make_mlp_kernel(np_list)
    grid = (Bp // TB,)

    def run(single_buffer_residents):
        res_kwargs = (dict(pipeline_mode=pl.Buffered(buffer_count=1))
                      if single_buffer_residents else {})
        in_specs = [pl.BlockSpec((TB, K0p), lambda i: (i, 0)),              # input: pipelined
                    pl.BlockSpec(b_all.shape, lambda i: (0, 0), **res_kwargs)]  # biases: resident
        for w in w_list:
            in_specs.append(pl.BlockSpec(w.shape, lambda i: (0, 0), **res_kwargs))  # weights: resident
        return pl.pallas_call(
            kernel,
            out_shape=jax.ShapeDtypeStruct((Bp, Np_last), out_dtype),
            grid=grid,
            in_specs=in_specs,
            out_specs=pl.BlockSpec((TB, Np_last), lambda i: (i, 0)),
            compiler_params=pltpu.CompilerParams(
                dimension_semantics=("parallel",),           # shard batch tiles on v7x's 2 TCs
                vmem_limit_bytes=vmem_limit,
            ),
            cost_estimate=pl.CostEstimate(
                flops=int(flops), transcendentals=0, bytes_accessed=int(bytes_accessed)),
        )(xp, b_all, *w_list)

    try:
        out = run(True)      # single-buffer the grid-invariant weights / biases
    except Exception:
        # TODO(synk): pl.Buffered(1) unsupported in this jax build; fall back to
        # default double-buffered resident specs (semantics identical).
        out = run(False)

    return out[:B, :output_dim]                              # strip batch / lane padding


if __name__ == "__main__":
    key = jax.random.PRNGKey(0)
    k_in, k_param = jax.random.split(key)

    # Small shapes consistent with the module: x flattens to (B, input_dim).
    B = 2
    input_dim = 64       # 4*4*4
    dim = 32
    output_dim = 16
    n_blk = 3

    x = jax.random.normal(k_in, (B, 4, 4, 4), dtype=jnp.float32)
    params = init_mlp_params(k_param, input_dim, output_dim, dim, n_blk)
    prepared = prepare_mlp_params(params)

    out = mlp_forward(x, prepared, output_dim)               # f32 output (module semantics)
    out = jax.block_until_ready(out)
    assert out.shape == (B, output_dim)

    # Reference 1: same bf16-matmul / f32-accumulate math as the kernel.
    h_bf = x.reshape(B, -1).astype(jnp.bfloat16)
    ref_bf = None
    for i, (w, b) in enumerate(params):
        acc = jnp.dot(h_bf, w.astype(jnp.bfloat16),
                      preferred_element_type=jnp.float32) + b.astype(jnp.float32)
        if i < n_blk - 1:
            h_bf = jnp.maximum(acc, 0.0).astype(jnp.bfloat16)
        else:
            ref_bf = acc
    assert jnp.allclose(out, ref_bf, atol=1e-2, rtol=1e-2), \
        float(jnp.max(jnp.abs(out - ref_bf)))

    # Reference 2: full f32 math (module semantics), looser bf16 tolerance.
    h32 = x.reshape(B, -1)
    for i, (w, b) in enumerate(params):
        h32 = h32 @ w + b
        if i < n_blk - 1:
            h32 = jnp.maximum(h32, 0.0)
    assert jnp.allclose(out, h32, atol=1e-1, rtol=1e-1), \
        float(jnp.max(jnp.abs(out - h32)))

    print("KERNEL_OK")
</pallas_src>

<mosaic_0001>
module attributes {stable_mosaic.version = 11 : i64} {
  func.func @kernel(%arg0: i32, %arg1: memref<8x128xbf16, #tpu.memory_space<vmem>>, %arg2: memref<3x128xf32, #tpu.memory_space<vmem>>, %arg3: memref<128x128xbf16, #tpu.memory_space<vmem>>, %arg4: memref<128x128xbf16, #tpu.memory_space<vmem>>, %arg5: memref<128x128xbf16, #tpu.memory_space<vmem>>, %arg6: memref<8x128xf32, #tpu.memory_space<vmem>>) attributes {dimension_semantics = [#tpu.dimension_semantics<parallel>], iteration_bounds = array<i64: 1>, scalar_prefetch = 0 : i64, scratch_operands = 0 : i64, tpu.core_type = #tpu.core_type<tc>, window_params = [{transform_indices = @transform_0, window_bounds = array<i64: 8, 128>}, {pipeline_mode = #tpu.pipeline_mode<synchronous>, transform_indices = @transform_1, window_bounds = array<i64: 3, 128>}, {pipeline_mode = #tpu.pipeline_mode<synchronous>, transform_indices = @transform_2, window_bounds = array<i64: 128, 128>}, {pipeline_mode = #tpu.pipeline_mode<synchronous>, transform_indices = @transform_3, window_bounds = array<i64: 128, 128>}, {pipeline_mode = #tpu.pipeline_mode<synchronous>, transform_indices = @transform_4, window_bounds = array<i64: 128, 128>}, {transform_indices = @transform_5, window_bounds = array<i64: 8, 128>}]} {
    %c0 = arith.constant 0 : index
    %c0_0 = arith.constant 0 : index
    %0 = vector.load %arg1[%c0, %c0_0] : memref<8x128xbf16, #tpu.memory_space<vmem>>, vector<8x128xbf16>
    %c0_1 = arith.constant 0 : index
    %c0_2 = arith.constant 0 : index
    %1 = vector.load %arg3[%c0_1, %c0_2] : memref<128x128xbf16, #tpu.memory_space<vmem>>, vector<128x128xbf16>
    %c0_3 = arith.constant 0 : index
    %c0_4 = arith.constant 0 : index
    %2 = vector.load %arg2[%c0_3, %c0_4] : memref<3x128xf32, #tpu.memory_space<vmem>>, vector<1x128xf32>
    %cst = arith.constant dense<0.000000e+00> : vector<8x128xf32>
    %3 = tpu.matmul %0, %1, %cst {dimension_numbers = #tpu.dot_dimension_numbers<[1], [0], [0], [1], [0, 0, 1, 1], [], []>} : vector<8x128xbf16>, vector<128x128xbf16>, vector<8x128xf32> -> vector<8x128xf32>
    %4 = vector.broadcast %2 : vector<1x128xf32> to vector<8x128xf32>
    %5 = arith.addf %3, %4 : vector<8x128xf32>
    %cst_5 = arith.constant 0.000000e+00 : f32
    %6 = vector.broadcast %cst_5 : f32 to vector<8x128xf32>
    %7 = arith.maximumf %5, %6 : vector<8x128xf32>
    %8 = arith.truncf %7 : vector<8x128xf32> to vector<8x128xbf16>
    %c0_6 = arith.constant 0 : index
    %c0_7 = arith.constant 0 : index
    %9 = vector.load %arg4[%c0_6, %c0_7] : memref<128x128xbf16, #tpu.memory_space<vmem>>, vector<128x128xbf16>
    %c1 = arith.constant 1 : index
    %c0_8 = arith.constant 0 : index
    %10 = vector.load %arg2[%c1, %c0_8] : memref<3x128xf32, #tpu.memory_space<vmem>>, vector<1x128xf32>
    %cst_9 = arith.constant dense<0.000000e+00> : vector<8x128xf32>
    %11 = tpu.matmul %8, %9, %cst_9 {dimension_numbers = #tpu.dot_dimension_numbers<[1], [0], [0], [1], [0, 0, 1, 1], [], []>} : vector<8x128xbf16>, vector<128x128xbf16>, vector<8x128xf32> -> vector<8x128xf32>
    %12 = vector.broadcast %10 : vector<1x128xf32> to vector<8x128xf32>
    %13 = arith.addf %11, %12 : vector<8x128xf32>
    %cst_10 = arith.constant 0.000000e+00 : f32
    %14 = vector.broadcast %cst_10 : f32 to vector<8x128xf32>
    %15 = arith.maximumf %13, %14 : vector<8x128xf32>
    %16 = arith.truncf %15 : vector<8x128xf32> to vector<8x128xbf16>
    %c0_11 = arith.constant 0 : index
    %c0_12 = arith.constant 0 : index
    %17 = vector.load %arg5[%c0_11, %c0_12] : memref<128x128xbf16, #tpu.memory_space<vmem>>, vector<128x128xbf16>
    %c2 = arith.constant 2 : index
    %c0_13 = arith.constant 0 : index
    %18 = vector.load %arg2[%c2, %c0_13] : memref<3x128xf32, #tpu.memory_space<vmem>>, vector<1x128xf32>
    %cst_14 = arith.constant dense<0.000000e+00> : vector<8x128xf32>
    %19 = tpu.matmul %16, %17, %cst_14 {dimension_numbers = #tpu.dot_dimension_numbers<[1], [0], [0], [1], [0, 0, 1, 1], [], []>} : vector<8x128xbf16>, vector<128x128xbf16>, vector<8x128xf32> -> vector<8x128xf32>
    %20 = vector.broadcast %18 : vector<1x128xf32> to vector<8x128xf32>
    %21 = arith.addf %19, %20 : vector<8x128xf32>
    %c0_15 = arith.constant 0 : index
    %c0_16 = arith.constant 0 : index
    %22 = vector.load %arg6[%c0_15, %c0_16] : memref<8x128xf32, #tpu.memory_space<vmem>>, vector<8x128xf32>
    tpu.vector_store %arg6[%c0_15, %c0_16], %21 {strides = array<i32>} : memref<8x128xf32, #tpu.memory_space<vmem>>, vector<8x128xf32>,
    return
  }
  func.func @transform_0(%arg0: i32) -> (i32, i32) {
    %c0_i32 = arith.constant 0 : i32
    %c0_i32_0 = arith.constant 0 : i32
    return %arg0, %c0_i32 : i32, i32
  }
  func.func @transform_1(%arg0: i32) -> (i32, i32) {
    %c0_i32 = arith.constant 0 : i32
    %c0_i32_0 = arith.constant 0 : i32
    %c0_i32_1 = arith.constant 0 : i32
    return %c0_i32, %c0_i32_0 : i32, i32
  }
  func.func @transform_2(%arg0: i32) -> (i32, i32) {
    %c0_i32 = arith.constant 0 : i32
    %c0_i32_0 = arith.constant 0 : i32
    %c0_i32_1 = arith.constant 0 : i32
    return %c0_i32, %c0_i32_0 : i32, i32
  }
  func.func @transform_3(%arg0: i32) -> (i32, i32) {
    %c0_i32 = arith.constant 0 : i32
    %c0_i32_0 = arith.constant 0 : i32
    %c0_i32_1 = arith.constant 0 : i32
    return %c0_i32, %c0_i32_0 : i32, i32
  }
  func.func @transform_4(%arg0: i32) -> (i32, i32) {
    %c0_i32 = arith.constant 0 : i32
    %c0_i32_0 = arith.constant 0 : i32
    %c0_i32_1 = arith.constant 0 : i32
    return %c0_i32, %c0_i32_0 : i32, i32
  }
  func.func @transform_5(%arg0: i32) -> (i32, i32) {
    %c0_i32 = arith.constant 0 : i32
    %c0_i32_0 = arith.constant 0 : i32
    return %arg0, %c0_i32 : i32, i32
  }
}

module attributes {stable_mosaic.version = 11 : i64} {
  func.func @kernel(%arg0: i32, %arg1: memref<8x128xbf16, #tpu.memory_space<vmem>>, %arg2: memref<3x128xf32, #tpu.memory_space<vmem>>, %arg3: memref<128x128xbf16, #tpu.memory_space<vmem>>, %arg4: memref<128x128xbf16, #tpu.memory_space<vmem>>, %arg5: memref<128x128xbf16, #tpu.memory_space<vmem>>, %arg6: memref<8x128xf32, #tpu.memory_space<vmem>>) attributes {dimension_semantics = [#tpu.dimension_semantics<parallel>], iteration_bounds = array<i64: 1>, scalar_prefetch = 0 : i64, scratch_operands = 0 : i64, tpu.core_type = #tpu.core_type<tc>, window_params = [{transform_indices = @transform_0, window_bounds = array<i64: 8, 128>}, {pipeline_mode = #tpu.pipeline_mode<synchronous>, transform_indices = @transform_1, window_bounds = array<i64: 3, 128>}, {pipeline_mode = #tpu.pipeline_mode<synchronous>, transform_indices = @transform_2, window_bounds = array<i64: 128, 128>}, {pipeline_mode = #tpu.pipeline_mode<synchronous>, transform_indices = @transform_3, window_bounds = array<i64: 128, 128>}, {pipeline_mode = #tpu.pipeline_mode<synchronous>, transform_indices = @transform_4, window_bounds = array<i64: 128, 128>}, {transform_indices = @transform_5, window_bounds = array<i64: 8, 128>}]} {
    %c0 = arith.constant 0 : index
    %c0_0 = arith.constant 0 : index
    %0 = vector.load %arg1[%c0, %c0_0] : memref<8x128xbf16, #tpu.memory_space<vmem>>, vector<8x128xbf16>
    %c0_1 = arith.constant 0 : index
    %c0_2 = arith.constant 0 : index
    %1 = vector.load %arg3[%c0_1, %c0_2] : memref<128x128xbf16, #tpu.memory_space<vmem>>, vector<128x128xbf16>
    %c0_3 = arith.constant 0 : index
    %c0_4 = arith.constant 0 : index
    %2 = vector.load %arg2[%c0_3, %c0_4] : memref<3x128xf32, #tpu.memory_space<vmem>>, vector<1x128xf32>
    %cst = arith.constant dense<0.000000e+00> : vector<8x128xf32>
    %3 = tpu.matmul %0, %1, %cst {dimension_numbers = #tpu.dot_dimension_numbers<[1], [0], [0], [1], [0, 0, 1, 1], [], []>} : vector<8x128xbf16>, vector<128x128xbf16>, vector<8x128xf32> -> vector<8x128xf32>
    %4 = vector.broadcast %2 : vector<1x128xf32> to vector<8x128xf32>
    %5 = arith.addf %3, %4 : vector<8x128xf32>
    %cst_5 = arith.constant 0.000000e+00 : f32
    %6 = vector.broadcast %cst_5 : f32 to vector<8x128xf32>
    %7 = arith.maximumf %5, %6 : vector<8x128xf32>
    %8 = arith.truncf %7 : vector<8x128xf32> to vector<8x128xbf16>
    %c0_6 = arith.constant 0 : index
    %c0_7 = arith.constant 0 : index
    %9 = vector.load %arg4[%c0_6, %c0_7] : memref<128x128xbf16, #tpu.memory_space<vmem>>, vector<128x128xbf16>
    %c1 = arith.constant 1 : index
    %c0_8 = arith.constant 0 : index
    %10 = vector.load %arg2[%c1, %c0_8] : memref<3x128xf32, #tpu.memory_space<vmem>>, vector<1x128xf32>
    %cst_9 = arith.constant dense<0.000000e+00> : vector<8x128xf32>
    %11 = tpu.matmul %8, %9, %cst_9 {dimension_numbers = #tpu.dot_dimension_numbers<[1], [0], [0], [1], [0, 0, 1, 1], [], []>} : vector<8x128xbf16>, vector<128x128xbf16>, vector<8x128xf32> -> vector<8x128xf32>
    %12 = vector.broadcast %10 : vector<1x128xf32> to vector<8x128xf32>
    %13 = arith.addf %11, %12 : vector<8x128xf32>
    %cst_10 = arith.constant 0.000000e+00 : f32
    %14 = vector.broadcast %cst_10 : f32 to vector<8x128xf32>
    %15 = arith.maximumf %13, %14 : vector<8x128xf32>
    %16 = arith.truncf %15 : vector<8x128xf32> to vector<8x128xbf16>
    %c0_11 = arith.constant 0 : index
    %c0_12 = arith.constant 0 : index
    %17 = vector.load %arg5[%c0_11, %c0_12] : memref<128x128xbf16, #tpu.memory_space<vmem>>, vector<128x128xbf16>
    %c2 = arith.constant 2 : index
    %c0_13 = arith.constant 0 : index
    %18 = vector.load %arg2[%c2, %c0_13] : memref<3x128xf32, #tpu.memory_space<vmem>>, vector<1x128xf32>
    %cst_14 = arith.constant dense<0.000000e+00> : vector<8x128xf32>
    %19 = tpu.matmul %16, %17, %cst_14 {dimension_numbers = #tpu.dot_dimension_numbers<[1], [0], [0], [1], [0, 0, 1, 1], [], []>} : vector<8x128xbf16>, vector<128x128xbf16>, vector<8x128xf32> -> vector<8x128xf32>
    %20 = vector.broadcast %18 : vector<1x128xf32> to vector<8x128xf32>
    %21 = arith.addf %19, %20 : vector<8x128xf32>
    %c0_15 = arith.constant 0 : index
    %c0_16 = arith.constant 0 : index
    %22 = vector.load %arg6[%c0_15, %c0_16] : memref<8x128xf32, #tpu.memory_space<vmem>>, vector<8x128xf32>
    tpu.vector_store %arg6[%c0_15, %c0_16], %21 {strides = array<i32>} : memref<8x128xf32, #tpu.memory_space<vmem>>, vector<8x128xf32>,
    return
  }
  func.func @transform_0(%arg0: i32) -> (i32, i32) {
    %c0_i32 = arith.constant 0 : i32
    %c0_i32_0 = arith.constant 0 : i32
    return %arg0, %c0_i32 : i32, i32
  }
  func.func @transform_1(%arg0: i32) -> (i32, i32) {
    %c0_i32 = arith.constant 0 : i32
    %c0_i32_0 = arith.constant 0 : i32
    %c0_i32_1 = arith.constant 0 : i32
    return %c0_i32, %c0_i32_0 : i32, i32
  }
  func.func @transform_2(%arg0: i32) -> (i32, i32) {
    %c0_i32 = arith.constant 0 : i32
    %c0_i32_0 = arith.constant 0 : i32
    %c0_i32_1 = arith.constant 0 : i32
    return %c0_i32, %c0_i32_0 : i32, i32
  }
  func.func @transform_3(%arg0: i32) -> (i32, i32) {
    %c0_i32 = arith.constant 0 : i32
    %c0_i32_0 = arith.constant 0 : i32
    %c0_i32_1 = arith.constant 0 : i32
    return %c0_i32, %c0_i32_0 : i32, i32
  }
  func.func @transform_4(%arg0: i32) -> (i32, i32) {
    %c0_i32 = arith.constant 0 : i32
    %c0_i32_0 = arith.constant 0 : i32
    %c0_i32_1 = arith.constant 0 : i32
    return %c0_i32, %c0_i32_0 : i32, i32
  }
  func.func @transform_5(%arg0: i32) -> (i32, i32) {
    %c0_i32 = arith.constant 0 : i32
    %c0_i32_0 = arith.constant 0 : i32
    return %arg0, %c0_i32 : i32, i32
  }
}

</mosaic_0001>

<llo_original>
// kernel: tpu_custom_call.1
$region0: #{tpu_custom_call.1}
  #allocation0 [shape = 'u32[]', space=smem, size = 0x4, offset = 0x4, fixed_abs, tag = 'smem constant byte address 0x4 - core index']
  #allocation1 [shape = 'u32[144,128]{1,0:T(1,128)}', space=vmem, size = 0x12000, scoped, tag = 'internal scratch']
  %s0 = inlined_call_operand.hbm [shape: bf16[8,128], index: 0, kind: input, shape index: {}]
  %s1 = inlined_call_operand.hbm [shape: f32[3,128], index: 1, kind: input, shape index: {}]
  %s2 = inlined_call_operand.hbm [shape: bf16[128,128], index: 2, kind: input, shape index: {}]
  %s3 = inlined_call_operand.hbm [shape: bf16[128,128], index: 3, kind: input, shape index: {}]
  %s4 = inlined_call_operand.hbm [shape: bf16[128,128], index: 4, kind: input, shape index: {}]
  %s5 = inlined_call_operand.hbm [shape: f32[8,128], index: 5, kind: output, shape index: {}]
  %s6 = sld [smem:[#allocation0]]
  $region50: #{tpu_custom_call.1} parent=0
    _
  %s8 = ssub.s32 1, %s6
  %s9 = scalar_select 0, %s8, %s6
  $region1: #{tpu_custom_call.1} parent=0
    #allocation2 [shape = 'u8[2048]{0}', space=vmem, size = 0x800, scoped, tag = 'input window, operand 0, single buffered']
    #allocation3 [shape = 's32[1]{0}', space=sflag, size = 0x4, scoped, tag = 'scoped memory for tpu_custom_call.1']
    #allocation4 [shape = 's32[1]{0}', space=sflag, size = 0x4, scoped, tag = 'scoped memory for tpu_custom_call.1']
    #allocation5 [shape = 'u8[2048]{0}', space=vmem, size = 0x800, scoped, tag = 'input window, operand 1, single buffered']
    #allocation6 [shape = 's32[1]{0}', space=sflag, size = 0x4, scoped, tag = 'scoped memory for tpu_custom_call.1']
    #allocation7 [shape = 'u8[32768]{0}', space=vmem, size = 0x8000, scoped, tag = 'input window, operand 2, single buffered']
    #allocation8 [shape = 'u8[32768]{0}', space=vmem, size = 0x8000, scoped, tag = 'input window, operand 3, single buffered']
    #allocation9 [shape = 's32[1]{0}', space=sflag, size = 0x4, scoped, tag = 'scoped memory for tpu_custom_call.1']
    #allocation10 [shape = 'u8[32768]{0}', space=vmem, size = 0x8000, scoped, tag = 'input window, operand 4, single buffered']
    #allocation11 [shape = 'u8[4096]{0}', space=vmem, size = 0x1000, scoped, tag = 'output window, operand 0, single buffered']
    %10 = vsyncpa [#allocation3], 0
    %11 = vsyncpa [#allocation6], 0
    %12 = vsyncpa [#allocation9], 0
    %13 = vsyncpa [#allocation4], 0
    // Predicated region
    $region2: #{tpu_custom_call.1} parent=1 // pred_check
      _
    $region3: #{tpu_custom_call.1} parent=1 // pred_check_branch
      %15 = sbr.rel (0) target = $region5
    $region4: #{tpu_custom_call.1} parent=1 // pred_region
      %s17 = ssub.s32 64, 64
      %18 = vsyncadd [#allocation3], %s17
      %s20 = sshll.u32 [#allocation2], 4
      %s21 = int_to_ptr.vmem [resolvable:$true] %s20
      %23 = dma.hbm_to_vmem [thread:$0]  %s0, 64, %s21, [#allocation3]
    $region5: #{tpu_custom_call.1} parent=1 // pred_fallthru
      _
    // Predicated region
    $region6: #{tpu_custom_call.1} parent=1 // pred_check
      _
    $region7: #{tpu_custom_call.1} parent=1 // pred_check_branch
      %25 = sbr.rel (0) target = $region9
    $region8: #{tpu_custom_call.1} parent=1 // pred_region
      %s27 = ssub.s32 64, 64
      %28 = vsyncadd [#allocation6], %s27
      %s30 = sshll.u32 [#allocation5], 4
      %s31 = int_to_ptr.vmem [resolvable:$true] %s30
      %33 = dma.hbm_to_vmem [thread:$0]  %s1, 64, %s31, [#allocation6]
    $region9: #{tpu_custom_call.1} parent=1 // pred_fallthru
      _
    // Predicated region
    $region10: #{tpu_custom_call.1} parent=1 // pred_check
      _
    $region11: #{tpu_custom_call.1} parent=1 // pred_check_branch
      %35 = sbr.rel (0) target = $region13
    $region12: #{tpu_custom_call.1} parent=1 // pred_region
      %s37 = ssub.s32 1024, 1024
      %38 = vsyncadd [#allocation6], %s37
      %s39 = sshll.u32 [#allocation7], 4
      %s40 = int_to_ptr.vmem [resolvable:$true] %s39
      %45 = dma.hbm_to_vmem [thread:$0]  %s2, 1024, %s40, [#allocation6], 64, 64, 4
    $region13: #{tpu_custom_call.1} parent=1 // pred_fallthru
      _
    // Predicated region
    $region14: #{tpu_custom_call.1} parent=1 // pred_check
      _
    $region15: #{tpu_custom_call.1} parent=1 // pred_check_branch
      %47 = sbr.rel (0) target = $region17
    $region16: #{tpu_custom_call.1} parent=1 // pred_region
      %s49 = ssub.s32 1024, 1024
      %50 = vsyncadd [#allocation9], %s49
      %s51 = sshll.u32 [#allocation8], 4
      %s52 = int_to_ptr.vmem [resolvable:$true] %s51
      %57 = dma.hbm_to_vmem [thread:$0]  %s3, 1024, %s52, [#allocation9], 64, 64, 4
    $region17: #{tpu_custom_call.1} parent=1 // pred_fallthru
      _
    // Predicated region
    $region18: #{tpu_custom_call.1} parent=1 // pred_check
      _
    $region19: #{tpu_custom_call.1} parent=1 // pred_check_branch
      %59 = sbr.rel (0) target = $region21
    $region20: #{tpu_custom_call.1} parent=1 // pred_region
      %s61 = ssub.s32 1024, 1024
      %62 = vsyncadd [#allocation9], %s61
      %s63 = sshll.u32 [#allocation10], 4
      %s64 = int_to_ptr.vmem [resolvable:$true] %s63
      %69 = dma.hbm_to_vmem [thread:$0]  %s4, 1024, %s64, [#allocation9], 64, 64, 4
    $region21: #{tpu_custom_call.1} parent=1 // pred_fallthru
      _
    // Predicated region
    $region22: #{tpu_custom_call.1} parent=1 // pred_check
      _
    $region23: #{tpu_custom_call.1} parent=1 // pred_check_branch
      %71 = sbr.rel (0) target = $region25
    $region24: #{tpu_custom_call.1} parent=1 // pred_region
      %72 = dma.done [#allocation3], 64
    $region25: #{tpu_custom_call.1} parent=1 // pred_fallthru
      _
    // Predicated region
    $region26: #{tpu_custom_call.1} parent=1 // pred_check
      _
    $region27: #{tpu_custom_call.1} parent=1 // pred_check_branch
      %74 = sbr.rel (0) target = $region29
    $region28: #{tpu_custom_call.1} parent=1 // pred_region
      %75 = dma.done [#allocation6], 64
    $region29: #{tpu_custom_call.1} parent=1 // pred_fallthru
      _
    // Predicated region
    $region30: #{tpu_custom_call.1} parent=1 // pred_check
      _
    $region31: #{tpu_custom_call.1} parent=1 // pred_check_branch
      %77 = sbr.rel (0) target = $region33
    $region32: #{tpu_custom_call.1} parent=1 // pred_region
      %78 = dma.done [#allocation6], 1024
    $region33: #{tpu_custom_call.1} parent=1 // pred_fallthru
      _
    // Predicated region
    $region34: #{tpu_custom_call.1} parent=1 // pred_check
      _
    $region35: #{tpu_custom_call.1} parent=1 // pred_check_branch
      %80 = sbr.rel (0) target = $region37
    $region36: #{tpu_custom_call.1} parent=1 // pred_region
      %81 = dma.done [#allocation9], 1024
    $region37: #{tpu_custom_call.1} parent=1 // pred_fallthru
      _
    // Predicated region
    $region38: #{tpu_custom_call.1} parent=1 // pred_check
      _
    $region39: #{tpu_custom_call.1} parent=1 // pred_check_branch
      %83 = sbr.rel (0) target = $region41
    $region40: #{tpu_custom_call.1} parent=1 // pred_region
      %84 = dma.done [#allocation9], 1024
    $region41: #{tpu_custom_call.1} parent=1 // pred_fallthru
      _
    %v86 = vld [vmem:[#allocation2] sm:$0xf]
    %v87 = vld [vmem:[#allocation7] sm:$0xf]
    %v88 = vld [vmem:[#allocation7 + $0x4] sm:$0xf]
    %v89 = vld [vmem:[#allocation7 + $0x8] sm:$0xf]
    %v90 = vld [vmem:[#allocation7 + $0xc] sm:$0xf]
    %v91 = vld [vmem:[#allocation7 + $0x10] sm:$0xf]
    %v92 = vld [vmem:[#allocation7 + $0x14] sm:$0xf]
    %v93 = vld [vmem:[#allocation7 + $0x18] sm:$0xf]
    %v94 = vld [vmem:[#allocation7 + $0x1c] sm:$0xf]
    %v95 = vld [vmem:[#allocation7 + $0x20] sm:$0xf]
    %v96 = vld [vmem:[#allocation7 + $0x24] sm:$0xf]
    %v97 = vld [vmem:[#allocation7 + $0x28] sm:$0xf]
    %v98 = vld [vmem:[#allocation7 + $0x2c] sm:$0xf]
    %v99 = vld [vmem:[#allocation7 + $0x30] sm:$0xf]
    %v100 = vld [vmem:[#allocation7 + $0x34] sm:$0xf]
    %v101 = vld [vmem:[#allocation7 + $0x38] sm:$0xf]
    %v102 = vld [vmem:[#allocation7 + $0x3c] sm:$0xf]
    %v103 = vld [vmem:[#allocation5] sm:$0x1]
    %v104 = vlaneseq
    %v105 = vshrl.u32 %v104, 7
    %v106 = vsub.s32 0, %v105
    %v107 = vrot.slane %v103, %v106
    %v124 = vunpack.c.l.b16 %v87
    %v125 = vunpack.c.l.b16 %v88
    %v126 = vunpack.c.l.b16 %v89
    %v127 = vunpack.c.l.b16 %v90
    %v128 = vunpack.c.l.b16 %v91
    %v129 = vunpack.c.l.b16 %v92
    %v130 = vunpack.c.l.b16 %v93
    %v131 = vunpack.c.l.b16 %v94
    %v132 = vunpack.c.l.b16 %v95
    %v133 = vunpack.c.l.b16 %v96
    %v134 = vunpack.c.l.b16 %v97
    %v135 = vunpack.c.l.b16 %v98
    %v136 = vunpack.c.l.b16 %v99
    %v137 = vunpack.c.l.b16 %v100
    %v138 = vunpack.c.l.b16 %v101
    %v139 = vunpack.c.l.b16 %v102
    %v140 = vpack.c.b16 %v125, %v124
    %v141 = vpack.c.b16 %v127, %v126
    %v142 = vpack.c.b16 %v129, %v128
    %v143 = vpack.c.b16 %v131, %v130
    %v144 = vpack.c.b16 %v133, %v132
    %v145 = vpack.c.b16 %v135, %v134
    %v146 = vpack.c.b16 %v137, %v136
    %v147 = vpack.c.b16 %v139, %v138
    %156 = vmatprep.subr.bf16.mxu0 0
    %157 = vmatpush1.bf16.msra.mxu0 %v140
    %158 = vmatprep.subr.bf16.mxu0 0
    %159 = vmatpush1.bf16.msra.mxu0 %v141
    %160 = vmatprep.subr.bf16.mxu0 0
    %161 = vmatpush1.bf16.msra.mxu0 %v142
    %162 = vmatprep.subr.bf16.mxu0 0
    %163 = vmatpush1.bf16.msra.mxu0 %v143
    %164 = vmatprep.subr.bf16.mxu0 0
    %165 = vmatpush1.bf16.msra.mxu0 %v144
    %166 = vmatprep.subr.bf16.mxu0 0
    %167 = vmatpush1.bf16.msra.mxu0 %v145
    %168 = vmatprep.subr.bf16.mxu0 0
    %169 = vmatpush1.bf16.msra.mxu0 %v146
    %170 = vmatprep.subr.bf16.mxu0 0
    %171 = vmatpush1.bf16.msra.mxu0 %v147
    %172 = vmatprep.subr.bf16.mxu0 0
    %173 = vmatpush1.bf16.msra.mxu0 0
    %174 = vmatprep.subr.bf16.mxu0 0
    %175 = vmatpush1.bf16.msra.mxu0 0
    %176 = vmatprep.subr.bf16.mxu0 0
    %177 = vmatpush1.bf16.msra.mxu0 0
    %178 = vmatprep.subr.bf16.mxu0 0
    %179 = vmatpush1.bf16.msra.mxu0 0
    %180 = vmatprep.subr.bf16.mxu0 0
    %181 = vmatpush1.bf16.msra.mxu0 0
    %182 = vmatprep.subr.bf16.mxu0 0
    %183 = vmatpush1.bf16.msra.mxu0 0
    %184 = vmatprep.subr.bf16.mxu0 0
    %185 = vmatpush1.bf16.msra.mxu0 0
    %186 = vmatprep.subr.bf16.mxu0 0
    %187 = vmatpush1.bf16.msra.mxu0 0
    %188 = vmatprep.mubr.bf16.mxu0 0
    %189 = vmatmul.mubr.bf16.gmra.mrb[0].mxu0 %v86
    %v190 = vpop.f32.mrb[0].mxu0
    %v191 = vadd.f32 %v107, %v190
    %v192 = vpop.f32.mrb[0].mxu0
    %v193 = vpop.f32.mrb[0].mxu0
    %v194 = vpop.f32.mrb[0].mxu0
    %195 = vdwg.mxu0
    %v196 = vmax.f32 %v191, 0.0
    %v197 = vpack.c.bf16 %v196, %v196
    %v198 = vld [vmem:[#allocation8] sm:$0xf]
    %v199 = vld [vmem:[#allocation8 + $0x4] sm:$0xf]
    %v200 = vld [vmem:[#allocation8 + $0x8] sm:$0xf]
    %v201 = vld [vmem:[#allocation8 + $0xc] sm:$0xf]
    %v202 = vld [vmem:[#allocation8 + $0x10] sm:$0xf]
    %v203 = vld [vmem:[#allocation8 + $0x14] sm:$0xf]
    %v204 = vld [vmem:[#allocation8 + $0x18] sm:$0xf]
    %v205 = vld [vmem:[#allocation8 + $0x1c] sm:$0xf]
    %v206 = vld [vmem:[#allocation8 + $0x20] sm:$0xf]
    %v207 = vld [vmem:[#allocation8 + $0x24] sm:$0xf]
    %v208 = vld [vmem:[#allocation8 + $0x28] sm:$0xf]
    %v209 = vld [vmem:[#allocation8 + $0x2c] sm:$0xf]
    %v210 = vld [vmem:[#allocation8 + $0x30] sm:$0xf]
    %v211 = vld [vmem:[#allocation8 + $0x34] sm:$0xf]
    %v212 = vld [vmem:[#allocation8 + $0x38] sm:$0xf]
    %v213 = vld [vmem:[#allocation8 + $0x3c] sm:$0xf]
    %v214 = vld [vmem:[#allocation5 + $0x1] sm:$0x1]
    %v215 = vlaneseq
    %v216 = vshrl.u32 %v215, 7
    %v217 = vsub.s32 0, %v216
    %v218 = vrot.slane %v214, %v217
    %v235 = vunpack.c.l.b16 %v198
    %v236 = vunpack.c.l.b16 %v199
    %v237 = vunpack.c.l.b16 %v200
    %v238 = vunpack.c.l.b16 %v201
    %v239 = vunpack.c.l.b16 %v202
    %v240 = vunpack.c.l.b16 %v203
    %v241 = vunpack.c.l.b16 %v204
    %v242 = vunpack.c.l.b16 %v205
    %v243 = vunpack.c.l.b16 %v206
    %v244 = vunpack.c.l.b16 %v207
    %v245 = vunpack.c.l.b16 %v208
    %v246 = vunpack.c.l.b16 %v209
    %v247 = vunpack.c.l.b16 %v210
    %v248 = vunpack.c.l.b16 %v211
    %v249 = vunpack.c.l.b16 %v212
    %v250 = vunpack.c.l.b16 %v213
    %v251 = vpack.c.b16 %v236, %v235
    %v252 = vpack.c.b16 %v238, %v237
    %v253 = vpack.c.b16 %v240, %v239
    %v254 = vpack.c.b16 %v242, %v241
    %v255 = vpack.c.b16 %v244, %v243
    %v256 = vpack.c.b16 %v246, %v245
    %v257 = vpack.c.b16 %v248, %v247
    %v258 = vpack.c.b16 %v250, %v249
    %267 = vmatprep.subr.bf16.mxu0 0
    %268 = vmatpush1.bf16.msra.mxu0 %v251
    %269 = vmatprep.subr.bf16.mxu0 0
    %270 = vmatpush1.bf16.msra.mxu0 %v252
    %271 = vmatprep.subr.bf16.mxu0 0
    %272 = vmatpush1.bf16.msra.mxu0 %v253
    %273 = vmatprep.subr.bf16.mxu0 0
    %274 = vmatpush1.bf16.msra.mxu0 %v254
    %275 = vmatprep.subr.bf16.mxu0 0
    %276 = vmatpush1.bf16.msra.mxu0 %v255
    %277 = vmatprep.subr.bf16.mxu0 0
    %278 = vmatpush1.bf16.msra.mxu0 %v256
    %279 = vmatprep.subr.bf16.mxu0 0
    %280 = vmatpush1.bf16.msra.mxu0 %v257
    %281 = vmatprep.subr.bf16.mxu0 0
    %282 = vmatpush1.bf16.msra.mxu0 %v258
    %283 = vmatprep.subr.bf16.mxu0 0
    %284 = vmatpush1.bf16.msra.mxu0 0
    %285 = vmatprep.subr.bf16.mxu0 0
    %286 = vmatpush1.bf16.msra.mxu0 0
    %287 = vmatprep.subr.bf16.mxu0 0
    %288 = vmatpush1.bf16.msra.mxu0 0
    %289 = vmatprep.subr.bf16.mxu0 0
    %290 = vmatpush1.bf16.msra.mxu0 0
    %291 = vmatprep.subr.bf16.mxu0 0
    %292 = vmatpush1.bf16.msra.mxu0 0
    %293 = vmatprep.subr.bf16.mxu0 0
    %294 = vmatpush1.bf16.msra.mxu0 0
    %295 = vmatprep.subr.bf16.mxu0 0
    %296 = vmatpush1.bf16.msra.mxu0 0
    %297 = vmatprep.subr.bf16.mxu0 0
    %298 = vmatpush1.bf16.msra.mxu0 0
    %299 = vmatprep.mubr.bf16.mxu0 0
    %300 = vmatmul.mubr.bf16.gmra.mrb[0].mxu0 %v197
    %v301 = vpop.f32.mrb[0].mxu0
    %v302 = vadd.f32 %v218, %v301
    %v303 = vpop.f32.mrb[0].mxu0
    %v304 = vpop.f32.mrb[0].mxu0
    %v305 = vpop.f32.mrb[0].mxu0
    %306 = vdwg.mxu0
    %v307 = vmax.f32 %v302, 0.0
    %v308 = vpack.c.bf16 %v307, %v307
    %v309 = vld [vmem:[#allocation10] sm:$0xf]
    %v310 = vld [vmem:[#allocation10 + $0x4] sm:$0xf]
    %v311 = vld [vmem:[#allocation10 + $0x8] sm:$0xf]
    %v312 = vld [vmem:[#allocation10 + $0xc] sm:$0xf]
    %v313 = vld [vmem:[#allocation10 + $0x10] sm:$0xf]
    %v314 = vld [vmem:[#allocation10 + $0x14] sm:$0xf]
    %v315 = vld [vmem:[#allocation10 + $0x18] sm:$0xf]
    %v316 = vld [vmem:[#allocation10 + $0x1c] sm:$0xf]
    %v317 = vld [vmem:[#allocation10 + $0x20] sm:$0xf]
    %v318 = vld [vmem:[#allocation10 + $0x24] sm:$0xf]
    %v319 = vld [vmem:[#allocation10 + $0x28] sm:$0xf]
    %v320 = vld [vmem:[#allocation10 + $0x2c] sm:$0xf]
    %v321 = vld [vmem:[#allocation10 + $0x30] sm:$0xf]
    %v322 = vld [vmem:[#allocation10 + $0x34] sm:$0xf]
    %v323 = vld [vmem:[#allocation10 + $0x38] sm:$0xf]
    %v324 = vld [vmem:[#allocation10 + $0x3c] sm:$0xf]
    %v325 = vld [vmem:[#allocation5 + $0x2] sm:$0x1]
    %v326 = vlaneseq
    %v327 = vshrl.u32 %v326, 7
    %v328 = vsub.s32 0, %v327
    %v329 = vrot.slane %v325, %v328
    %v346 = vunpack.c.l.b16 %v309
    %v347 = vunpack.c.l.b16 %v310
    %v348 = vunpack.c.l.b16 %v311
    %v349 = vunpack.c.l.b16 %v312
    %v350 = vunpack.c.l.b16 %v313
    %v351 = vunpack.c.l.b16 %v314
    %v352 = vunpack.c.l.b16 %v315
    %v353 = vunpack.c.l.b16 %v316
    %v354 = vunpack.c.l.b16 %v317
    %v355 = vunpack.c.l.b16 %v318
    %v356 = vunpack.c.l.b16 %v319
    %v357 = vunpack.c.l.b16 %v320
    %v358 = vunpack.c.l.b16 %v321
    %v359 = vunpack.c.l.b16 %v322
    %v360 = vunpack.c.l.b16 %v323
    %v361 = vunpack.c.l.b16 %v324
    %v362 = vpack.c.b16 %v347, %v346
    %v363 = vpack.c.b16 %v349, %v348
    %v364 = vpack.c.b16 %v351, %v350
    %v365 = vpack.c.b16 %v353, %v352
    %v366 = vpack.c.b16 %v355, %v354
    %v367 = vpack.c.b16 %v357, %v356
    %v368 = vpack.c.b16 %v359, %v358
    %v369 = vpack.c.b16 %v361, %v360
    %378 = vmatprep.subr.bf16.mxu0 0
    %379 = vmatpush1.bf16.msra.mxu0 %v362
    %380 = vmatprep.subr.bf16.mxu0 0
    %381 = vmatpush1.bf16.msra.mxu0 %v363
    %382 = vmatprep.subr.bf16.mxu0 0
    %383 = vmatpush1.bf16.msra.mxu0 %v364
    %384 = vmatprep.subr.bf16.mxu0 0
    %385 = vmatpush1.bf16.msra.mxu0 %v365
    %386 = vmatprep.subr.bf16.mxu0 0
    %387 = vmatpush1.bf16.msra.mxu0 %v366
    %388 = vmatprep.subr.bf16.mxu0 0
    %389 = vmatpush1.bf16.msra.mxu0 %v367
    %390 = vmatprep.subr.bf16.mxu0 0
    %391 = vmatpush1.bf16.msra.mxu0 %v368
    %392 = vmatprep.subr.bf16.mxu0 0
    %393 = vmatpush1.bf16.msra.mxu0 %v369
    %394 = vmatprep.subr.bf16.mxu0 0
    %395 = vmatpush1.bf16.msra.mxu0 0
    %396 = vmatprep.subr.bf16.mxu0 0
    %397 = vmatpush1.bf16.msra.mxu0 0
    %398 = vmatprep.subr.bf16.mxu0 0
    %399 = vmatpush1.bf16.msra.mxu0 0
    %400 = vmatprep.subr.bf16.mxu0 0
    %401 = vmatpush1.bf16.msra.mxu0 0
    %402 = vmatprep.subr.bf16.mxu0 0
    %403 = vmatpush1.bf16.msra.mxu0 0
    %404 = vmatprep.subr.bf16.mxu0 0
    %405 = vmatpush1.bf16.msra.mxu0 0
    %406 = vmatprep.subr.bf16.mxu0 0
    %407 = vmatpush1.bf16.msra.mxu0 0
    %408 = vmatprep.subr.bf16.mxu0 0
    %409 = vmatpush1.bf16.msra.mxu0 0
    %410 = vmatprep.mubr.bf16.mxu0 0
    %411 = vmatmul.mubr.bf16.gmra.mrb[0].mxu0 %v308
    %v412 = vpop.f32.mrb[0].mxu0
    %v413 = vadd.f32 %v329, %v412
    %v414 = vpop.f32.mrb[0].mxu0
    %v415 = vpop.f32.mrb[0].mxu0
    %v416 = vpop.f32.mrb[0].mxu0
    %417 = vdwg.mxu0
    %418 = vst [vmem:[#allocation11] sm:$0xff] %v413
    // Predicated region
    $region42: #{tpu_custom_call.1} parent=1 // pred_check
      _
    $region43: #{tpu_custom_call.1} parent=1 // pred_check_branch
      %420 = sbr.rel (0) target = $region45
    $region44: #{tpu_custom_call.1} parent=1 // pred_region
      %s422 = ssub.s32 128, 128
      %423 = vsyncadd [#allocation4], %s422
      %s425 = sshll.u32 [#allocation11], 4
      %s426 = int_to_ptr.vmem [resolvable:$true] %s425
      %428 = dma.vmem_to_hbm [thread:$0]  %s426, 128, %s5, [#allocation4]
    $region45: #{tpu_custom_call.1} parent=1 // pred_fallthru
      _
    // Predicated region
    $region46: #{tpu_custom_call.1} parent=1 // pred_check
      _
    $region47: #{tpu_custom_call.1} parent=1 // pred_check_branch
      %430 = sbr.rel (0) target = $region49
    $region48: #{tpu_custom_call.1} parent=1 // pred_region
      %431 = dma.done [#allocation4], 128
    $region49: #{tpu_custom_call.1} parent=1 // pred_fallthru
      _
    %432 = vsyncpa [#allocation3], 1
    %433 = vsyncpa [#allocation6], 1
    %434 = vsyncpa [#allocation9], 1
    %435 = vsyncpa [#allocation4], 1

// kernel: tpu_custom_call.1
$region0: #{tpu_custom_call.1}
  #allocation0 [shape = 'u32[]', space=smem, size = 0x4, offset = 0x4, fixed_abs, tag = 'smem constant byte address 0x4 - core index']
  #allocation1 [shape = 'u32[144,128]{1,0:T(1,128)}', space=vmem, size = 0x12000, scoped, tag = 'internal scratch']
  %s0 = inlined_call_operand.hbm [shape: bf16[8,128], index: 0, kind: input, shape index: {}]
  %s1 = inlined_call_operand.hbm [shape: f32[3,128], index: 1, kind: input, shape index: {}]
  %s2 = inlined_call_operand.hbm [shape: bf16[128,128], index: 2, kind: input, shape index: {}]
  %s3 = inlined_call_operand.hbm [shape: bf16[128,128], index: 3, kind: input, shape index: {}]
  %s4 = inlined_call_operand.hbm [shape: bf16[128,128], index: 4, kind: input, shape index: {}]
  %s5 = inlined_call_operand.hbm [shape: f32[8,128], index: 5, kind: output, shape index: {}]
  %s6 = sld [smem:[#allocation0]]
  $region50: #{tpu_custom_call.1} parent=0
    _
  %s8 = ssub.s32 1, %s6
  %s9 = scalar_select 0, %s8, %s6
  $region1: #{tpu_custom_call.1} parent=0
    #allocation2 [shape = 'u8[2048]{0}', space=vmem, size = 0x800, scoped, tag = 'input window, operand 0, single buffered']
    #allocation3 [shape = 's32[1]{0}', space=sflag, size = 0x4, scoped, tag = 'scoped memory for tpu_custom_call.1']
    #allocation4 [shape = 's32[1]{0}', space=sflag, size = 0x4, scoped, tag = 'scoped memory for tpu_custom_call.1']
    #allocation5 [shape = 'u8[2048]{0}', space=vmem, size = 0x800, scoped, tag = 'input window, operand 1, single buffered']
    #allocation6 [shape = 's32[1]{0}', space=sflag, size = 0x4, scoped, tag = 'scoped memory for tpu_custom_call.1']
    #allocation7 [shape = 'u8[32768]{0}', space=vmem, size = 0x8000, scoped, tag = 'input window, operand 2, single buffered']
    #allocation8 [shape = 'u8[32768]{0}', space=vmem, size = 0x8000, scoped, tag = 'input window, operand 3, single buffered']
    #allocation9 [shape = 's32[1]{0}', space=sflag, size = 0x4, scoped, tag = 'scoped memory for tpu_custom_call.1']
    #allocation10 [shape = 'u8[32768]{0}', space=vmem, size = 0x8000, scoped, tag = 'input window, operand 4, single buffered']
    #allocation11 [shape = 'u8[4096]{0}', space=vmem, size = 0x1000, scoped, tag = 'output window, operand 0, single buffered']
    %10 = vsyncpa [#allocation3], 0
    %11 = vsyncpa [#allocation6], 0
    %12 = vsyncpa [#allocation9], 0
    %13 = vsyncpa [#allocation4], 0
    // Predicated region
    $region2: #{tpu_custom_call.1} parent=1 // pred_check
      _
    $region3: #{tpu_custom_call.1} parent=1 // pred_check_branch
      %15 = sbr.rel (0) target = $region5
    $region4: #{tpu_custom_call.1} parent=1 // pred_region
      %s17 = ssub.s32 64, 64
      %18 = vsyncadd [#allocation3], %s17
      %s20 = sshll.u32 [#allocation2], 4
      %s21 = int_to_ptr.vmem [resolvable:$true] %s20
      %23 = dma.hbm_to_vmem [thread:$0]  %s0, 64, %s21, [#allocation3]
    $region5: #{tpu_custom_call.1} parent=1 // pred_fallthru
      _
    // Predicated region
    $region6: #{tpu_custom_call.1} parent=1 // pred_check
      _
    $region7: #{tpu_custom_call.1} parent=1 // pred_check_branch
      %25 = sbr.rel (0) target = $region9
    $region8: #{tpu_custom_call.1} parent=1 // pred_region
      %s27 = ssub.s32 64, 64
      %28 = vsyncadd [#allocation6], %s27
      %s30 = sshll.u32 [#allocation5], 4
      %s31 = int_to_ptr.vmem [resolvable:$true] %s30
      %33 = dma.hbm_to_vmem [thread:$0]  %s1, 64, %s31, [#allocation6]
    $region9: #{tpu_custom_call.1} parent=1 // pred_fallthru
      _
    // Predicated region
    $region10: #{tpu_custom_call.1} parent=1 // pred_check
      _
    $region11: #{tpu_custom_call.1} parent=1 // pred_check_branch
      %35 = sbr.rel (0) target = $region13
    $region12: #{tpu_custom_call.1} parent=1 // pred_region
      %s37 = ssub.s32 1024, 1024
      %38 = vsyncadd [#allocation6], %s37
      %s39 = sshll.u32 [#allocation7], 4
      %s40 = int_to_ptr.vmem [resolvable:$true] %s39
      %45 = dma.hbm_to_vmem [thread:$0]  %s2, 1024, %s40, [#allocation6], 64, 64, 4
    $region13: #{tpu_custom_call.1} parent=1 // pred_fallthru
      _
    // Predicated region
    $region14: #{tpu_custom_call.1} parent=1 // pred_check
      _
    $region15: #{tpu_custom_call.1} parent=1 // pred_check_branch
      %47 = sbr.rel (0) target = $region17
    $region16: #{tpu_custom_call.1} parent=1 // pred_region
      %s49 = ssub.s32 1024, 1024
      %50 = vsyncadd [#allocation9], %s49
      %s51 = sshll.u32 [#allocation8], 4
      %s52 = int_to_ptr.vmem [resolvable:$true] %s51
      %57 = dma.hbm_to_vmem [thread:$0]  %s3, 1024, %s52, [#allocation9], 64, 64, 4
    $region17: #{tpu_custom_call.1} parent=1 // pred_fallthru
      _
    // Predicated region
    $region18: #{tpu_custom_call.1} parent=1 // pred_check
      _
    $region19: #{tpu_custom_call.1} parent=1 // pred_check_branch
      %59 = sbr.rel (0) target = $region21
    $region20: #{tpu_custom_call.1} parent=1 // pred_region
      %s61 = ssub.s32 1024, 1024
      %62 = vsyncadd [#allocation9], %s61
      %s63 = sshll.u32 [#allocation10], 4
      %s64 = int_to_ptr.vmem [resolvable:$true] %s63
      %69 = dma.hbm_to_vmem [thread:$0]  %s4, 1024, %s64, [#allocation9], 64, 64, 4
    $region21: #{tpu_custom_call.1} parent=1 // pred_fallthru
      _
    // Predicated region
    $region22: #{tpu_custom_call.1} parent=1 // pred_check
      _
    $region23: #{tpu_custom_call.1} parent=1 // pred_check_branch
      %71 = sbr.rel (0) target = $region25
    $region24: #{tpu_custom_call.1} parent=1 // pred_region
      %72 = dma.done [#allocation3], 64
    $region25: #{tpu_custom_call.1} parent=1 // pred_fallthru
      _
    // Predicated region
    $region26: #{tpu_custom_call.1} parent=1 // pred_check
      _
    $region27: #{tpu_custom_call.1} parent=1 // pred_check_branch
      %74 = sbr.rel (0) target = $region29
    $region28: #{tpu_custom_call.1} parent=1 // pred_region
      %75 = dma.done [#allocation6], 64
    $region29: #{tpu_custom_call.1} parent=1 // pred_fallthru
      _
    // Predicated region
    $region30: #{tpu_custom_call.1} parent=1 // pred_check
      _
    $region31: #{tpu_custom_call.1} parent=1 // pred_check_branch
      %77 = sbr.rel (0) target = $region33
    $region32: #{tpu_custom_call.1} parent=1 // pred_region
      %78 = dma.done [#allocation6], 1024
    $region33: #{tpu_custom_call.1} parent=1 // pred_fallthru
      _
    // Predicated region
    $region34: #{tpu_custom_call.1} parent=1 // pred_check
      _
    $region35: #{tpu_custom_call.1} parent=1 // pred_check_branch
      %80 = sbr.rel (0) target = $region37
    $region36: #{tpu_custom_call.1} parent=1 // pred_region
      %81 = dma.done [#allocation9], 1024
    $region37: #{tpu_custom_call.1} parent=1 // pred_fallthru
      _
    // Predicated region
    $region38: #{tpu_custom_call.1} parent=1 // pred_check
      _
    $region39: #{tpu_custom_call.1} parent=1 // pred_check_branch
      %83 = sbr.rel (0) target = $region41
    $region40: #{tpu_custom_call.1} parent=1 // pred_region
      %84 = dma.done [#allocation9], 1024
    $region41: #{tpu_custom_call.1} parent=1 // pred_fallthru
      _
    %v86 = vld [vmem:[#allocation2] sm:$0xf]
    %v87 = vld [vmem:[#allocation7] sm:$0xf]
    %v88 = vld [vmem:[#allocation7 + $0x4] sm:$0xf]
    %v89 = vld [vmem:[#allocation7 + $0x8] sm:$0xf]
    %v90 = vld [vmem:[#allocation7 + $0xc] sm:$0xf]
    %v91 = vld [vmem:[#allocation7 + $0x10] sm:$0xf]
    %v92 = vld [vmem:[#allocation7 + $0x14] sm:$0xf]
    %v93 = vld [vmem:[#allocation7 + $0x18] sm:$0xf]
    %v94 = vld [vmem:[#allocation7 + $0x1c] sm:$0xf]
    %v95 = vld [vmem:[#allocation7 + $0x20] sm:$0xf]
    %v96 = vld [vmem:[#allocation7 + $0x24] sm:$0xf]
    %v97 = vld [vmem:[#allocation7 + $0x28] sm:$0xf]
    %v98 = vld [vmem:[#allocation7 + $0x2c] sm:$0xf]
    %v99 = vld [vmem:[#allocation7 + $0x30] sm:$0xf]
    %v100 = vld [vmem:[#allocation7 + $0x34] sm:$0xf]
    %v101 = vld [vmem:[#allocation7 + $0x38] sm:$0xf]
    %v102 = vld [vmem:[#allocation7 + $0x3c] sm:$0xf]
    %v103 = vld [vmem:[#allocation5] sm:$0x1]
    %v104 = vlaneseq
    %v105 = vshrl.u32 %v104, 7
    %v106 = vsub.s32 0, %v105
    %v107 = vrot.slane %v103, %v106
    %v124 = vunpack.c.l.b16 %v87
    %v125 = vunpack.c.l.b16 %v88
    %v126 = vunpack.c.l.b16 %v89
    %v127 = vunpack.c.l.b16 %v90
    %v128 = vunpack.c.l.b16 %v91
    %v129 = vunpack.c.l.b16 %v92
    %v130 = vunpack.c.l.b16 %v93
    %v131 = vunpack.c.l.b16 %v94
    %v132 = vunpack.c.l.b16 %v95
    %v133 = vunpack.c.l.b16 %v96
    %v134 = vunpack.c.l.b16 %v97
    %v135 = vunpack.c.l.b16 %v98
    %v136 = vunpack.c.l.b16 %v99
    %v137 = vunpack.c.l.b16 %v100
    %v138 = vunpack.c.l.b16 %v101
    %v139 = vunpack.c.l.b16 %v102
    %v140 = vpack.c.b16 %v125, %v124
    %v141 = vpack.c.b16 %v127, %v126
    %v142 = vpack.c.b16 %v129, %v128
    %v143 = vpack.c.b16 %v131, %v130
    %v144 = vpack.c.b16 %v133, %v132
    %v145 = vpack.c.b16 %v135, %v134
    %v146 = vpack.c.b16 %v137, %v136
    %v147 = vpack.c.b16 %v139, %v138
    %156 = vmatprep.subr.bf16.mxu0 0
    %157 = vmatpush1.bf16.msra.mxu0 %v140
    %158 = vmatprep.subr.bf16.mxu0 0
    %159 = vmatpush1.bf16.msra.mxu0 %v141
    %160 = vmatprep.subr.bf16.mxu0 0
    %161 = vmatpush1.bf16.msra.mxu0 %v142
    %162 = vmatprep.subr.bf16.mxu0 0
    %163 = vmatpush1.bf16.msra.mxu0 %v143
    %164 = vmatprep.subr.bf16.mxu0 0
    %165 = vmatpush1.bf16.msra.mxu0 %v144
    %166 = vmatprep.subr.bf16.mxu0 0
    %167 = vmatpush1.bf16.msra.mxu0 %v145
    %168 = vmatprep.subr.bf16.mxu0 0
    %169 = vmatpush1.bf16.msra.mxu0 %v146
    %170 = vmatprep.subr.bf16.mxu0 0
    %171 = vmatpush1.bf16.msra.mxu0 %v147
    %172 = vmatprep.subr.bf16.mxu0 0
    %173 = vmatpush1.bf16.msra.mxu0 0
    %174 = vmatprep.subr.bf16.mxu0 0
    %175 = vmatpush1.bf16.msra.mxu0 0
    %176 = vmatprep.subr.bf16.mxu0 0
    %177 = vmatpush1.bf16.msra.mxu0 0
    %178 = vmatprep.subr.bf16.mxu0 0
    %179 = vmatpush1.bf16.msra.mxu0 0
    %180 = vmatprep.subr.bf16.mxu0 0
    %181 = vmatpush1.bf16.msra.mxu0 0
    %182 = vmatprep.subr.bf16.mxu0 0
    %183 = vmatpush1.bf16.msra.mxu0 0
    %184 = vmatprep.subr.bf16.mxu0 0
    %185 = vmatpush1.bf16.msra.mxu0 0
    %186 = vmatprep.subr.bf16.mxu0 0
    %187 = vmatpush1.bf16.msra.mxu0 0
    %188 = vmatprep.mubr.bf16.mxu0 0
    %189 = vmatmul.mubr.bf16.gmra.mrb[0].mxu0 %v86
    %v190 = vpop.f32.mrb[0].mxu0
    %v191 = vadd.f32 %v107, %v190
    %v192 = vpop.f32.mrb[0].mxu0
    %v193 = vpop.f32.mrb[0].mxu0
    %v194 = vpop.f32.mrb[0].mxu0
    %195 = vdwg.mxu0
    %v196 = vmax.f32 %v191, 0.0
    %v197 = vpack.c.bf16 %v196, %v196
    %v198 = vld [vmem:[#allocation8] sm:$0xf]
    %v199 = vld [vmem:[#allocation8 + $0x4] sm:$0xf]
    %v200 = vld [vmem:[#allocation8 + $0x8] sm:$0xf]
    %v201 = vld [vmem:[#allocation8 + $0xc] sm:$0xf]
    %v202 = vld [vmem:[#allocation8 + $0x10] sm:$0xf]
    %v203 = vld [vmem:[#allocation8 + $0x14] sm:$0xf]
    %v204 = vld [vmem:[#allocation8 + $0x18] sm:$0xf]
    %v205 = vld [vmem:[#allocation8 + $0x1c] sm:$0xf]
    %v206 = vld [vmem:[#allocation8 + $0x20] sm:$0xf]
    %v207 = vld [vmem:[#allocation8 + $0x24] sm:$0xf]
    %v208 = vld [vmem:[#allocation8 + $0x28] sm:$0xf]
    %v209 = vld [vmem:[#allocation8 + $0x2c] sm:$0xf]
    %v210 = vld [vmem:[#allocation8 + $0x30] sm:$0xf]
    %v211 = vld [vmem:[#allocation8 + $0x34] sm:$0xf]
    %v212 = vld [vmem:[#allocation8 + $0x38] sm:$0xf]
    %v213 = vld [vmem:[#allocation8 + $0x3c] sm:$0xf]
    %v214 = vld [vmem:[#allocation5 + $0x1] sm:$0x1]
    %v215 = vlaneseq
    %v216 = vshrl.u32 %v215, 7
    %v217 = vsub.s32 0, %v216
    %v218 = vrot.slane %v214, %v217
    %v235 = vunpack.c.l.b16 %v198
    %v236 = vunpack.c.l.b16 %v199
    %v237 = vunpack.c.l.b16 %v200
    %v238 = vunpack.c.l.b16 %v201
    %v239 = vunpack.c.l.b16 %v202
    %v240 = vunpack.c.l.b16 %v203
    %v241 = vunpack.c.l.b16 %v204
    %v242 = vunpack.c.l.b16 %v205
    %v243 = vunpack.c.l.b16 %v206
    %v244 = vunpack.c.l.b16 %v207
    %v245 = vunpack.c.l.b16 %v208
    %v246 = vunpack.c.l.b16 %v209
    %v247 = vunpack.c.l.b16 %v210
    %v248 = vunpack.c.l.b16 %v211
    %v249 = vunpack.c.l.b16 %v212
    %v250 = vunpack.c.l.b16 %v213
    %v251 = vpack.c.b16 %v236, %v235
    %v252 = vpack.c.b16 %v238, %v237
    %v253 = vpack.c.b16 %v240, %v239
    %v254 = vpack.c.b16 %v242, %v241
    %v255 = vpack.c.b16 %v244, %v243
    %v256 = vpack.c.b16 %v246, %v245
    %v257 = vpack.c.b16 %v248, %v247
    %v258 = vpack.c.b16 %v250, %v249
    %267 = vmatprep.subr.bf16.mxu0 0
    %268 = vmatpush1.bf16.msra.mxu0 %v251
    %269 = vmatprep.subr.bf16.mxu0 0
    %270 = vmatpush1.bf16.msra.mxu0 %v252
    %271 = vmatprep.subr.bf16.mxu0 0
    %272 = vmatpush1.bf16.msra.mxu0 %v253
    %273 = vmatprep.subr.bf16.mxu0 0
    %274 = vmatpush1.bf16.msra.mxu0 %v254
    %275 = vmatprep.subr.bf16.mxu0 0
    %276 = vmatpush1.bf16.msra.mxu0 %v255
    %277 = vmatprep.subr.bf16.mxu0 0
    %278 = vmatpush1.bf16.msra.mxu0 %v256
    %279 = vmatprep.subr.bf16.mxu0 0
    %280 = vmatpush1.bf16.msra.mxu0 %v257
    %281 = vmatprep.subr.bf16.mxu0 0
    %282 = vmatpush1.bf16.msra.mxu0 %v258
    %283 = vmatprep.subr.bf16.mxu0 0
    %284 = vmatpush1.bf16.msra.mxu0 0
    %285 = vmatprep.subr.bf16.mxu0 0
    %286 = vmatpush1.bf16.msra.mxu0 0
    %287 = vmatprep.subr.bf16.mxu0 0
    %288 = vmatpush1.bf16.msra.mxu0 0
    %289 = vmatprep.subr.bf16.mxu0 0
    %290 = vmatpush1.bf16.msra.mxu0 0
    %291 = vmatprep.subr.bf16.mxu0 0
    %292 = vmatpush1.bf16.msra.mxu0 0
    %293 = vmatprep.subr.bf16.mxu0 0
    %294 = vmatpush1.bf16.msra.mxu0 0
    %295 = vmatprep.subr.bf16.mxu0 0
    %296 = vmatpush1.bf16.msra.mxu0 0
    %297 = vmatprep.subr.bf16.mxu0 0
    %298 = vmatpush1.bf16.msra.mxu0 0
    %299 = vmatprep.mubr.bf16.mxu0 0
    %300 = vmatmul.mubr.bf16.gmra.mrb[0].mxu0 %v197
    %v301 = vpop.f32.mrb[0].mxu0
    %v302 = vadd.f32 %v218, %v301
    %v303 = vpop.f32.mrb[0].mxu0
    %v304 = vpop.f32.mrb[0].mxu0
    %v305 = vpop.f32.mrb[0].mxu0
    %306 = vdwg.mxu0
    %v307 = vmax.f32 %v302, 0.0
    %v308 = vpack.c.bf16 %v307, %v307
    %v309 = vld [vmem:[#allocation10] sm:$0xf]
    %v310 = vld [vmem:[#allocation10 + $0x4] sm:$0xf]
    %v311 = vld [vmem:[#allocation10 + $0x8] sm:$0xf]
    %v312 = vld [vmem:[#allocation10 + $0xc] sm:$0xf]
    %v313 = vld [vmem:[#allocation10 + $0x10] sm:$0xf]
    %v314 = vld [vmem:[#allocation10 + $0x14] sm:$0xf]
    %v315 = vld [vmem:[#allocation10 + $0x18] sm:$0xf]
    %v316 = vld [vmem:[#allocation10 + $0x1c] sm:$0xf]
    %v317 = vld [vmem:[#allocation10 + $0x20] sm:$0xf]
    %v318 = vld [vmem:[#allocation10 + $0x24] sm:$0xf]
    %v319 = vld [vmem:[#allocation10 + $0x28] sm:$0xf]
    %v320 = vld [vmem:[#allocation10 + $0x2c] sm:$0xf]
    %v321 = vld [vmem:[#allocation10 + $0x30] sm:$0xf]
    %v322 = vld [vmem:[#allocation10 + $0x34] sm:$0xf]
    %v323 = vld [vmem:[#allocation10 + $0x38] sm:$0xf]
    %v324 = vld [vmem:[#allocation10 + $0x3c] sm:$0xf]
    %v325 = vld [vmem:[#allocation5 + $0x2] sm:$0x1]
    %v326 = vlaneseq
    %v327 = vshrl.u32 %v326, 7
    %v328 = vsub.s32 0, %v327
    %v329 = vrot.slane %v325, %v328
    %v346 = vunpack.c.l.b16 %v309
    %v347 = vunpack.c.l.b16 %v310
    %v348 = vunpack.c.l.b16 %v311
    %v349 = vunpack.c.l.b16 %v312
    %v350 = vunpack.c.l.b16 %v313
    %v351 = vunpack.c.l.b16 %v314
    %v352 = vunpack.c.l.b16 %v315
    %v353 = vunpack.c.l.b16 %v316
    %v354 = vunpack.c.l.b16 %v317
    %v355 = vunpack.c.l.b16 %v318
    %v356 = vunpack.c.l.b16 %v319
    %v357 = vunpack.c.l.b16 %v320
    %v358 = vunpack.c.l.b16 %v321
    %v359 = vunpack.c.l.b16 %v322
    %v360 = vunpack.c.l.b16 %v323
    %v361 = vunpack.c.l.b16 %v324
    %v362 = vpack.c.b16 %v347, %v346
    %v363 = vpack.c.b16 %v349, %v348
    %v364 = vpack.c.b16 %v351, %v350
    %v365 = vpack.c.b16 %v353, %v352
    %v366 = vpack.c.b16 %v355, %v354
    %v367 = vpack.c.b16 %v357, %v356
    %v368 = vpack.c.b16 %v359, %v358
    %v369 = vpack.c.b16 %v361, %v360
    %378 = vmatprep.subr.bf16.mxu0 0
    %379 = vmatpush1.bf16.msra.mxu0 %v362
    %380 = vmatprep.subr.bf16.mxu0 0
    %381 = vmatpush1.bf16.msra.mxu0 %v363
    %382 = vmatprep.subr.bf16.mxu0 0
    %383 = vmatpush1.bf16.msra.mxu0 %v364
    %384 = vmatprep.subr.bf16.mxu0 0
    %385 = vmatpush1.bf16.msra.mxu0 %v365
    %386 = vmatprep.subr.bf16.mxu0 0
    %387 = vmatpush1.bf16.msra.mxu0 %v366
    %388 = vmatprep.subr.bf16.mxu0 0
    %389 = vmatpush1.bf16.msra.mxu0 %v367
    %390 = vmatprep.subr.bf16.mxu0 0
    %391 = vmatpush1.bf16.msra.mxu0 %v368
    %392 = vmatprep.subr.bf16.mxu0 0
    %393 = vmatpush1.bf16.msra.mxu0 %v369
    %394 = vmatprep.subr.bf16.mxu0 0
    %395 = vmatpush1.bf16.msra.mxu0 0
    %396 = vmatprep.subr.bf16.mxu0 0
    %397 = vmatpush1.bf16.msra.mxu0 0
    %398 = vmatprep.subr.bf16.mxu0 0
    %399 = vmatpush1.bf16.msra.mxu0 0
    %400 = vmatprep.subr.bf16.mxu0 0
    %401 = vmatpush1.bf16.msra.mxu0 0
    %402 = vmatprep.subr.bf16.mxu0 0
    %403 = vmatpush1.bf16.msra.mxu0 0
    %404 = vmatprep.subr.bf16.mxu0 0
    %405 = vmatpush1.bf16.msra.mxu0 0
    %406 = vmatprep.subr.bf16.mxu0 0
    %407 = vmatpush1.bf16.msra.mxu0 0
    %408 = vmatprep.subr.bf16.mxu0 0
    %409 = vmatpush1.bf16.msra.mxu0 0
    %410 = vmatprep.mubr.bf16.mxu0 0
    %411 = vmatmul.mubr.bf16.gmra.mrb[0].mxu0 %v308
    %v412 = vpop.f32.mrb[0].mxu0
    %v413 = vadd.f32 %v329, %v412
    %v414 = vpop.f32.mrb[0].mxu0
    %v415 = vpop.f32.mrb[0].mxu0
    %v416 = vpop.f32.mrb[0].mxu0
    %417 = vdwg.mxu0
    %418 = vst [vmem:[#allocation11] sm:$0xff] %v413
    // Predicated region
    $region42: #{tpu_custom_call.1} parent=1 // pred_check
      _
    $region43: #{tpu_custom_call.1} parent=1 // pred_check_branch
      %420 = sbr.rel (0) target = $region45
    $region44: #{tpu_custom_call.1} parent=1 // pred_region
      %s422 = ssub.s32 128, 128
      %423 = vsyncadd [#allocation4], %s422
      %s425 = sshll.u32 [#allocation11], 4
      %s426 = int_to_ptr.vmem [resolvable:$true] %s425
      %428 = dma.vmem_to_hbm [thread:$0]  %s426, 128, %s5, [#allocation4]
    $region45: #{tpu_custom_call.1} parent=1 // pred_fallthru
      _
    // Predicated region
    $region46: #{tpu_custom_call.1} parent=1 // pred_check
      _
    $region47: #{tpu_custom_call.1} parent=1 // pred_check_branch
      %430 = sbr.rel (0) target = $region49
    $region48: #{tpu_custom_call.1} parent=1 // pred_region
      %431 = dma.done [#allocation4], 128
    $region49: #{tpu_custom_call.1} parent=1 // pred_fallthru
      _
    %432 = vsyncpa [#allocation3], 1
    %433 = vsyncpa [#allocation6], 1
    %434 = vsyncpa [#allocation9], 1
    %435 = vsyncpa [#allocation4], 1

</llo_original>
